<compile_context>
chip_gen: v7x
topology: tpu7x:2x2x1
jax: 0.10.0
libtpu: 0.0.40
codegen_flags: <defaults>
</compile_context>

<pallas_src>
import math

import jax
import jax.numpy as jnp
import numpy as np
from jax.experimental import pallas as pl
from jax.experimental.pallas import tpu as pltpu


# ----------------------------------------------------------------------------
# Pallas kernel (single invocation, everything resident in VMEM).
#   ChebConv:  Tx_0 = X, Tx_1 = L_hat X, Tx_k = 2 L_hat Tx_{k-1} - Tx_{k-2}
#              acc_b = sum_k Tx_k[:, b-slice] @ W_k + bias
#   ELU:       elu(v) = v if v > 0 else exp(v) - 1
#   Pool:      out = down_transform @ elu(acc)
# ----------------------------------------------------------------------------
def enblock_kernel(lhat_ref, x_ref, w_ref, b_ref, dt_ref, out_ref):
    K, ci, co = w_ref.shape          # padded per-batch channel widths (static)
    n, bc = x_ref.shape
    B = bc // ci

    lhat = lhat_ref[...]             # bf16 [N, N]
    tx = x_ref[...]                  # f32  [N, B*ci]   (Tx_0, batch in lanes)
    tx_prev = None

    # Per-batch f32 accumulators for the ChebConv output (shared weights,
    # no block-diagonal expansion).
    accs = [jnp.zeros((n, co), jnp.float32) for _ in range(B)]

    for k in range(K):               # K is small & static: unrolled
        if k == 1:
            tx_prev, tx = tx, jnp.dot(lhat, tx.astype(jnp.bfloat16),
                                      preferred_element_type=jnp.float32)
        elif k >= 2:
            # Tx_k = 2 * L_hat @ Tx_{k-1} - Tx_{k-2}; the factor 2 is folded
            # into the small [N, B*ci] operand (no N x N scratch).
            tx_next = jnp.dot(lhat, (tx + tx).astype(jnp.bfloat16),
                              preferred_element_type=jnp.float32) - tx_prev
            tx_prev, tx = tx, tx_next

        w_k = w_ref[k]               # bf16 [ci, co], static index -> free view
        tx_bf = tx.astype(jnp.bfloat16)
        for b in range(B):           # tiny-B path: static lane slices
            accs[b] = accs[b] + jnp.dot(tx_bf[:, b * ci:(b + 1) * ci], w_k,
                                        preferred_element_type=jnp.float32)

    bias = b_ref[...]                # f32 [1, co]
    acts = []
    for b in range(B):
        a = accs[b] + bias
        # ELU(alpha=1) in f32; exp on clamped negatives runs on the EUP slot
        # (free while the MXU is the binding unit).
        acts.append(jnp.where(a > 0.0, a, jnp.exp(jnp.minimum(a, 0.0)) - 1.0))
    act = acts[0] if B == 1 else jnp.concatenate(acts, axis=1)   # [N, B*co]

    # Pool: down_transform @ act -> [M, B*co]; lane-dense, unmasked store.
    out_ref[...] = jnp.dot(dt_ref[...], act.astype(jnp.bfloat16),
                           preferred_element_type=jnp.float32
                           ).astype(out_ref.dtype)


def _pad_channels(c, batch, lane=128):
    """Smallest c_p >= c such that batch * c_p is a multiple of `lane`."""
    g = lane // math.gcd(batch, lane)
    return ((c + g - 1) // g) * g


def enblock_forward(x, lhat, weight, bias, down_transform):
    """x: [B, N, C_in], lhat: [N, N], weight: [K, C_in, C_out],
    bias: [C_out], down_transform: [M, N]  ->  [B, M, C_out]."""
    B, N, C_in = x.shape
    K, _, C_out = weight.shape
    M = down_transform.shape[0]

    ci_p = _pad_channels(C_in, B)    # B * ci_p is a multiple of 128
    co_p = _pad_channels(C_out, B)   # B * co_p is a multiple of 128

    # ---- wrapper-side layout plumbing (free, pure data movement) ----
    # Fold batch into the lane axis with (b, c) column order.
    x_fold = jnp.transpose(jnp.pad(x, ((0, 0), (0, 0), (0, ci_p - C_in))),
                           (1, 0, 2)).reshape(N, B * ci_p)
    w_pad = jnp.pad(weight, ((0, 0), (0, ci_p - C_in),
                             (0, co_p - C_out))).astype(jnp.bfloat16)
    bias_pad = jnp.pad(bias, (0, co_p - C_out)).astype(jnp.float32
                       ).reshape(1, co_p)
    lhat_bf = lhat.astype(jnp.bfloat16)
    dt_bf = down_transform.astype(jnp.bfloat16)

    # Advisory cost estimate for the XLA scheduler.
    flops = (2.0 * (K - 1) * N * N * B * ci_p        # Laplacian propagations
             + 2.0 * K * B * N * ci_p * co_p         # per-order weight dots
             + 2.0 * M * N * B * co_p)               # pooling matmul
    bytes_accessed = (2 * N * N + 4 * N * B * ci_p + 2 * K * ci_p * co_p
                      + 4 * co_p + 2 * M * N + 4 * M * B * co_p)

    out_fold = pl.pallas_call(
        enblock_kernel,
        out_shape=jax.ShapeDtypeStruct((M, B * co_p), x.dtype),
        in_specs=[
            pl.BlockSpec(memory_space=pltpu.MemorySpace.VMEM),  # lhat [N, N] bf16
            pl.BlockSpec(memory_space=pltpu.MemorySpace.VMEM),  # x    [N, B*ci_p] f32
            pl.BlockSpec(memory_space=pltpu.MemorySpace.VMEM),  # W    [K, ci_p, co_p] bf16
            pl.BlockSpec(memory_space=pltpu.MemorySpace.VMEM),  # bias [1, co_p] f32
            pl.BlockSpec(memory_space=pltpu.MemorySpace.VMEM),  # dt   [M, N] bf16
        ],
        out_specs=pl.BlockSpec(memory_space=pltpu.MemorySpace.VMEM),
        compiler_params=pltpu.CompilerParams(
            # Explicit budget; safe on v5e (16 MiB scoped default) / v6e / v7x.
            vmem_limit_bytes=32 << 20),
        cost_estimate=pl.CostEstimate(
            flops=int(flops),
            transcendentals=int(N * B * co_p),
            bytes_accessed=int(bytes_accessed)),
    )(lhat_bf, x_fold, w_pad, bias_pad, dt_bf)

    # Unfold batch from lanes, drop channel padding: [M, B*co_p] -> [B, M, C_out].
    return jnp.transpose(out_fold.reshape(M, B, co_p)[:, :, :C_out], (1, 0, 2))


# ----------------------------------------------------------------------------
# Plain-JAX glue: dense scaled Laplacian from edge_index
# (torch_geometric ChebConv, sym normalization, lambda_max = 2:
#  L_hat = -D^{-1/2} A D^{-1/2}).
# ----------------------------------------------------------------------------
def scaled_laplacian(edge_index, num_nodes):
    row, col = edge_index
    A = jnp.zeros((num_nodes, num_nodes), jnp.float32).at[row, col].add(1.0)
    deg = A.sum(axis=1)
    dinv = jnp.where(deg > 0, 1.0 / jnp.sqrt(deg), 0.0)
    return -(dinv[:, None] * A * dinv[None, :])


# Pure-JAX f32 reference for the correctness check.
def enblock_reference(x, lhat, weight, bias, down_transform):
    K = weight.shape[0]
    tx_prev = x
    out = jnp.einsum('bnc,co->bno', tx_prev, weight[0])
    if K > 1:
        tx_cur = jnp.einsum('nm,bmc->bnc', lhat, x)
        out = out + jnp.einsum('bnc,co->bno', tx_cur, weight[1])
        for k in range(2, K):
            tx_next = 2.0 * jnp.einsum('nm,bmc->bnc', lhat, tx_cur) - tx_prev
            out = out + jnp.einsum('bnc,co->bno', tx_next, weight[k])
            tx_prev, tx_cur = tx_cur, tx_next
    out = jax.nn.elu(out + bias)                                     # ELU
    return jnp.einsum('mn,bno->bmo', down_transform, out)            # Pool


if __name__ == "__main__":
    B, N, M = 2, 16, 8
    C_in, C_out, K = 4, 8, 3

    key = jax.random.PRNGKey(0)
    k_x, k_w = jax.random.split(key)

    # Input node features [B, N, C_in].
    x = jax.random.normal(k_x, (B, N, C_in), dtype=jnp.float32)

    # Ring graph on N nodes (both directions) -> edge_index [2, 2N].
    idx = np.arange(N)
    edge_index = jnp.asarray(
        np.stack([np.concatenate([idx, (idx + 1) % N]),
                  np.concatenate([(idx + 1) % N, idx])], axis=0),
        dtype=jnp.int32)

    # Xavier-uniform-like weight, zero bias (Enblock.reset_parameters semantics).
    bound = float(np.sqrt(6.0 / (C_in * C_out + K * C_out)))
    weight = jax.random.uniform(k_w, (K, C_in, C_out),
                                minval=-bound, maxval=bound,
                                dtype=jnp.float32)
    bias = jnp.zeros((C_out,), dtype=jnp.float32)

    # Sparse down_transform [M, N] densified: each coarse node averages 2 fine nodes.
    dt = np.zeros((M, N), dtype=np.float32)
    for m in range(M):
        dt[m, 2 * m] = 0.5
        dt[m, 2 * m + 1] = 0.5
    down_transform = jnp.asarray(dt)

    lhat = scaled_laplacian(edge_index, N)

    out = enblock_forward(x, lhat, weight, bias, down_transform)
    out = jax.block_until_ready(out)

    ref = enblock_reference(x, lhat, weight, bias, down_transform)
    # Kernel uses bf16 MXU operands (f32 accumulation); compare against the
    # f32 reference with bf16-appropriate tolerances.
    np.testing.assert_allclose(np.asarray(out), np.asarray(ref),
                               rtol=3e-2, atol=3e-2)

    print("KERNEL_OK")
</pallas_src>

<mosaic_0001>
module attributes {stable_mosaic.version = 11 : i64} {
  func.func @enblock_kernel(%arg0: memref<16x16xbf16, #tpu.memory_space<vmem>>, %arg1: memref<16x128xf32, #tpu.memory_space<vmem>>, %arg2: memref<3x64x64xbf16, #tpu.memory_space<vmem>>, %arg3: memref<1x64xf32, #tpu.memory_space<vmem>>, %arg4: memref<8x16xbf16, #tpu.memory_space<vmem>>, %arg5: memref<8x128xf32, #tpu.memory_space<vmem>>) attributes {dimension_semantics = [], scalar_prefetch = 0 : i64, scratch_operands = 0 : i64, tpu.core_type = #tpu.core_type<tc>} {
    %c0 = arith.constant 0 : index
    %c0_0 = arith.constant 0 : index
    %0 = vector.load %arg0[%c0, %c0_0] : memref<16x16xbf16, #tpu.memory_space<vmem>>, vector<16x16xbf16>
    %c0_1 = arith.constant 0 : index
    %c0_2 = arith.constant 0 : index
    %1 = vector.load %arg1[%c0_1, %c0_2] : memref<16x128xf32, #tpu.memory_space<vmem>>, vector<16x128xf32>
    %cst = arith.constant 0.000000e+00 : f32
    %2 = vector.broadcast %cst : f32 to vector<16x64xf32>
    %cst_3 = arith.constant 0.000000e+00 : f32
    %3 = vector.broadcast %cst_3 : f32 to vector<16x64xf32>
    %c0_4 = arith.constant 0 : index
    %c0_5 = arith.constant 0 : index
    %c0_6 = arith.constant 0 : index
    %4 = vector.load %arg2[%c0_4, %c0_5, %c0_6] : memref<3x64x64xbf16, #tpu.memory_space<vmem>>, vector<1x64x64xbf16>
    %5 = vector.shape_cast %4 : vector<1x64x64xbf16> to vector<64x64xbf16>
    %6 = arith.truncf %1 : vector<16x128xf32> to vector<16x128xbf16>
    %7 = vector.extract_strided_slice %6 {offsets = [0, 0], sizes = [16, 64], strides = [1, 1]} : vector<16x128xbf16> to vector<16x64xbf16>
    %cst_7 = arith.constant dense<0.000000e+00> : vector<16x64xf32>
    %8 = tpu.matmul %7, %5, %cst_7 {dimension_numbers = #tpu.dot_dimension_numbers<[1], [0], [0], [1], [0, 0, 1, 1], [], []>} : vector<16x64xbf16>, vector<64x64xbf16>, vector<16x64xf32> -> vector<16x64xf32>
    %9 = arith.addf %2, %8 : vector<16x64xf32>
    %10 = vector.extract_strided_slice %6 {offsets = [0, 64], sizes = [16, 64], strides = [1, 1]} : vector<16x128xbf16> to vector<16x64xbf16>
    %cst_8 = arith.constant dense<0.000000e+00> : vector<16x64xf32>
    %11 = tpu.matmul %10, %5, %cst_8 {dimension_numbers = #tpu.dot_dimension_numbers<[1], [0], [0], [1], [0, 0, 1, 1], [], []>} : vector<16x64xbf16>, vector<64x64xbf16>, vector<16x64xf32> -> vector<16x64xf32>
    %12 = arith.addf %3, %11 : vector<16x64xf32>
    %13 = arith.truncf %1 : vector<16x128xf32> to vector<16x128xbf16>
    %cst_9 = arith.constant dense<0.000000e+00> : vector<16x128xf32>
    %14 = tpu.matmul %0, %13, %cst_9 {dimension_numbers = #tpu.dot_dimension_numbers<[1], [0], [0], [1], [0, 0, 1, 1], [], []>} : vector<16x16xbf16>, vector<16x128xbf16>, vector<16x128xf32> -> vector<16x128xf32>
    %c1 = arith.constant 1 : index
    %c0_10 = arith.constant 0 : index
    %c0_11 = arith.constant 0 : index
    %15 = vector.load %arg2[%c1, %c0_10, %c0_11] : memref<3x64x64xbf16, #tpu.memory_space<vmem>>, vector<1x64x64xbf16>
    %16 = vector.shape_cast %15 : vector<1x64x64xbf16> to vector<64x64xbf16>
    %17 = arith.truncf %14 : vector<16x128xf32> to vector<16x128xbf16>
    %18 = vector.extract_strided_slice %17 {offsets = [0, 0], sizes = [16, 64], strides = [1, 1]} : vector<16x128xbf16> to vector<16x64xbf16>
    %cst_12 = arith.constant dense<0.000000e+00> : vector<16x64xf32>
    %19 = tpu.matmul %18, %16, %cst_12 {dimension_numbers = #tpu.dot_dimension_numbers<[1], [0], [0], [1], [0, 0, 1, 1], [], []>} : vector<16x64xbf16>, vector<64x64xbf16>, vector<16x64xf32> -> vector<16x64xf32>
    %20 = arith.addf %9, %19 : vector<16x64xf32>
    %21 = vector.extract_strided_slice %17 {offsets = [0, 64], sizes = [16, 64], strides = [1, 1]} : vector<16x128xbf16> to vector<16x64xbf16>
    %cst_13 = arith.constant dense<0.000000e+00> : vector<16x64xf32>
    %22 = tpu.matmul %21, %16, %cst_13 {dimension_numbers = #tpu.dot_dimension_numbers<[1], [0], [0], [1], [0, 0, 1, 1], [], []>} : vector<16x64xbf16>, vector<64x64xbf16>, vector<16x64xf32> -> vector<16x64xf32>
    %23 = arith.addf %12, %22 : vector<16x64xf32>
    %24 = arith.addf %14, %14 : vector<16x128xf32>
    %25 = arith.truncf %24 : vector<16x128xf32> to vector<16x128xbf16>
    %cst_14 = arith.constant dense<0.000000e+00> : vector<16x128xf32>
    %26 = tpu.matmul %0, %25, %cst_14 {dimension_numbers = #tpu.dot_dimension_numbers<[1], [0], [0], [1], [0, 0, 1, 1], [], []>} : vector<16x16xbf16>, vector<16x128xbf16>, vector<16x128xf32> -> vector<16x128xf32>
    %27 = arith.subf %26, %1 : vector<16x128xf32>
    %c2 = arith.constant 2 : index
    %c0_15 = arith.constant 0 : index
    %c0_16 = arith.constant 0 : index
    %28 = vector.load %arg2[%c2, %c0_15, %c0_16] : memref<3x64x64xbf16, #tpu.memory_space<vmem>>, vector<1x64x64xbf16>
    %29 = vector.shape_cast %28 : vector<1x64x64xbf16> to vector<64x64xbf16>
    %30 = arith.truncf %27 : vector<16x128xf32> to vector<16x128xbf16>
    %31 = vector.extract_strided_slice %30 {offsets = [0, 0], sizes = [16, 64], strides = [1, 1]} : vector<16x128xbf16> to vector<16x64xbf16>
    %cst_17 = arith.constant dense<0.000000e+00> : vector<16x64xf32>
    %32 = tpu.matmul %31, %29, %cst_17 {dimension_numbers = #tpu.dot_dimension_numbers<[1], [0], [0], [1], [0, 0, 1, 1], [], []>} : vector<16x64xbf16>, vector<64x64xbf16>, vector<16x64xf32> -> vector<16x64xf32>
    %33 = arith.addf %20, %32 : vector<16x64xf32>
    %34 = vector.extract_strided_slice %30 {offsets = [0, 64], sizes = [16, 64], strides = [1, 1]} : vector<16x128xbf16> to vector<16x64xbf16>
    %cst_18 = arith.constant dense<0.000000e+00> : vector<16x64xf32>
    %35 = tpu.matmul %34, %29, %cst_18 {dimension_numbers = #tpu.dot_dimension_numbers<[1], [0], [0], [1], [0, 0, 1, 1], [], []>} : vector<16x64xbf16>, vector<64x64xbf16>, vector<16x64xf32> -> vector<16x64xf32>
    %36 = arith.addf %23, %35 : vector<16x64xf32>
    %c0_19 = arith.constant 0 : index
    %c0_20 = arith.constant 0 : index
    %37 = vector.load %arg3[%c0_19, %c0_20] : memref<1x64xf32, #tpu.memory_space<vmem>>, vector<1x64xf32>
    %38 = vector.broadcast %37 : vector<1x64xf32> to vector<16x64xf32>
    %39 = arith.addf %33, %38 : vector<16x64xf32>
    %cst_21 = arith.constant 0.000000e+00 : f32
    %40 = vector.broadcast %cst_21 : f32 to vector<16x64xf32>
    %41 = arith.cmpf ogt, %39, %40 : vector<16x64xf32>
    %cst_22 = arith.constant 0.000000e+00 : f32
    %42 = vector.broadcast %cst_22 : f32 to vector<16x64xf32>
    %43 = arith.minimumf %39, %42 : vector<16x64xf32>
    %44 = math.exp %43 : vector<16x64xf32>
    %cst_23 = arith.constant 1.000000e+00 : f32
    %45 = vector.broadcast %cst_23 : f32 to vector<16x64xf32>
    %46 = arith.subf %44, %45 : vector<16x64xf32>
    %47 = arith.select %41, %39, %46 : vector<16x64xi1>, vector<16x64xf32>
    %48 = vector.broadcast %37 : vector<1x64xf32> to vector<16x64xf32>
    %49 = arith.addf %36, %48 : vector<16x64xf32>
    %cst_24 = arith.constant 0.000000e+00 : f32
    %50 = vector.broadcast %cst_24 : f32 to vector<16x64xf32>
    %51 = arith.cmpf ogt, %49, %50 : vector<16x64xf32>
    %cst_25 = arith.constant 0.000000e+00 : f32
    %52 = vector.broadcast %cst_25 : f32 to vector<16x64xf32>
    %53 = arith.minimumf %49, %52 : vector<16x64xf32>
    %54 = math.exp %53 : vector<16x64xf32>
    %cst_26 = arith.constant 1.000000e+00 : f32
    %55 = vector.broadcast %cst_26 : f32 to vector<16x64xf32>
    %56 = arith.subf %54, %55 : vector<16x64xf32>
    %57 = arith.select %51, %49, %56 : vector<16x64xi1>, vector<16x64xf32>
    %58 = tpu.concatenate %47, %57 in 1 : vector<16x64xf32>, vector<16x64xf32> -> vector<16x128xf32>
    %c0_27 = arith.constant 0 : index
    %c0_28 = arith.constant 0 : index
    %59 = vector.load %arg4[%c0_27, %c0_28] : memref<8x16xbf16, #tpu.memory_space<vmem>>, vector<8x16xbf16>
    %60 = arith.truncf %58 : vector<16x128xf32> to vector<16x128xbf16>
    %cst_29 = arith.constant dense<0.000000e+00> : vector<8x128xf32>
    %61 = tpu.matmul %59, %60, %cst_29 {dimension_numbers = #tpu.dot_dimension_numbers<[1], [0], [0], [1], [0, 0, 1, 1], [], []>} : vector<8x16xbf16>, vector<16x128xbf16>, vector<8x128xf32> -> vector<8x128xf32>
    %c0_30 = arith.constant 0 : index
    %c0_31 = arith.constant 0 : index
    %62 = vector.load %arg5[%c0_30, %c0_31] : memref<8x128xf32, #tpu.memory_space<vmem>>, vector<8x128xf32>
    tpu.vector_store %arg5[%c0_30, %c0_31], %61 {strides = array<i32>} : memref<8x128xf32, #tpu.memory_space<vmem>>, vector<8x128xf32>,
    return
  }
}

</mosaic_0001>

<llo_original>
// kernel: tpu_custom_call.1
$region0: #{tpu_custom_call.1}
  #allocation0 [shape = 'u32[]', space=smem, size = 0x4, offset = 0x4, fixed_abs, tag = 'smem constant byte address 0x4 - core index']
  #allocation1 [shape = 'u32[144,128]{1,0:T(1,128)}', space=vmem, size = 0x12000, scoped, tag = 'internal scratch']
  %s0 = inlined_call_operand.hbm [shape: bf16[16,16], index: 0, kind: input, shape index: {}]
  %s1 = inlined_call_operand.hbm [shape: f32[16,128], index: 1, kind: input, shape index: {}]
  %s2 = inlined_call_operand.hbm [shape: bf16[3,64,64], index: 2, kind: input, shape index: {}]
  %s3 = inlined_call_operand.vmem [shape: f32[1,64], index: 3, kind: input, shape index: {}]
  %s4 = inlined_call_operand.vmem [shape: bf16[8,16], index: 4, kind: input, shape index: {}]
  %s5 = inlined_call_operand.hbm [shape: f32[8,128], index: 5, kind: output, shape index: {}]
  %s6 = sld [smem:[#allocation0]]
  $region42: #{tpu_custom_call.1} parent=0
    _
  %s8 = ssub.s32 1, %s6
  %s9 = scalar_select 0, %s8, %s6
  $region1: #{tpu_custom_call.1} parent=0
    #allocation2 [shape = 'u8[4096]{0}', space=vmem, size = 0x1000, scoped, tag = 'input window, operand 0, single buffered']
    #allocation3 [shape = 's32[1]{0}', space=sflag, size = 0x4, scoped, tag = 'scoped memory for tpu_custom_call.1']
    #allocation4 [shape = 's32[1]{0}', space=sflag, size = 0x4, scoped, tag = 'scoped memory for tpu_custom_call.1']
    #allocation5 [shape = 'u8[8192]{0}', space=vmem, size = 0x2000, scoped, tag = 'input window, operand 1, single buffered']
    #allocation6 [shape = 's32[1]{0}', space=sflag, size = 0x4, scoped, tag = 'scoped memory for tpu_custom_call.1']
    #allocation7 [shape = 'u8[49152]{0}', space=vmem, size = 0xc000, scoped, tag = 'input window, operand 2, single buffered']
    #allocation8 [shape = 'u8[4096]{0}', space=vmem, size = 0x1000, scoped, tag = 'output window, operand 0, single buffered']
    %10 = vsyncpa [#allocation3], 0
    %11 = vsyncpa [#allocation6], 0
    %12 = vsyncpa [#allocation4], 0
    // Predicated region
    $region2: #{tpu_custom_call.1} parent=1 // pred_check
      _
    $region3: #{tpu_custom_call.1} parent=1 // pred_check_branch
      %14 = sbr.rel (0) target = $region5
    $region4: #{tpu_custom_call.1} parent=1 // pred_region
      %s16 = ssub.s32 128, 128
      %17 = vsyncadd [#allocation3], %s16
      %s18 = sshll.u32 [#allocation2], 4
      %s19 = int_to_ptr.vmem [resolvable:$true] %s18
      %24 = dma.hbm_to_vmem [thread:$0]  %s0, 128, %s19, [#allocation3], 64, 64, 4
    $region5: #{tpu_custom_call.1} parent=1 // pred_fallthru
      _
    // Predicated region
    $region6: #{tpu_custom_call.1} parent=1 // pred_check
      _
    $region7: #{tpu_custom_call.1} parent=1 // pred_check_branch
      %26 = sbr.rel (0) target = $region9
    $region8: #{tpu_custom_call.1} parent=1 // pred_region
      %s28 = ssub.s32 256, 256
      %29 = vsyncadd [#allocation6], %s28
      %s30 = sshll.u32 [#allocation5], 4
      %s31 = int_to_ptr.vmem [resolvable:$true] %s30
      %36 = dma.hbm_to_vmem [thread:$0]  %s1, 256, %s31, [#allocation6], 128, 128, 8
    $region9: #{tpu_custom_call.1} parent=1 // pred_fallthru
      _
    // Predicated region
    $region10: #{tpu_custom_call.1} parent=1 // pred_check
      _
    $region11: #{tpu_custom_call.1} parent=1 // pred_check_branch
      %38 = sbr.rel (0) target = $region13
    $region12: #{tpu_custom_call.1} parent=1 // pred_region
      %s40 = ssub.s32 1536, 1536
      %41 = vsyncadd [#allocation6], %s40
      %s42 = sshll.u32 [#allocation7], 4
      %s43 = int_to_ptr.vmem [resolvable:$true] %s42
      %48 = dma.hbm_to_vmem [thread:$0]  %s2, 1536, %s43, [#allocation6], 64, 64, 4
    $region13: #{tpu_custom_call.1} parent=1 // pred_fallthru
      _
    // Predicated region
    $region14: #{tpu_custom_call.1} parent=1 // pred_check
      _
    $region15: #{tpu_custom_call.1} parent=1 // pred_check_branch
      %50 = sbr.rel (0) target = $region17
    $region16: #{tpu_custom_call.1} parent=1 // pred_region
      _
    $region17: #{tpu_custom_call.1} parent=1 // pred_fallthru
      _
    // Predicated region
    $region18: #{tpu_custom_call.1} parent=1 // pred_check
      _
    $region19: #{tpu_custom_call.1} parent=1 // pred_check_branch
      %52 = sbr.rel (0) target = $region21
    $region20: #{tpu_custom_call.1} parent=1 // pred_region
      _
    $region21: #{tpu_custom_call.1} parent=1 // pred_fallthru
      _
    // Predicated region
    $region22: #{tpu_custom_call.1} parent=1 // pred_check
      _
    $region23: #{tpu_custom_call.1} parent=1 // pred_check_branch
      %54 = sbr.rel (0) target = $region25
    $region24: #{tpu_custom_call.1} parent=1 // pred_region
      %55 = dma.done [#allocation3], 128
    $region25: #{tpu_custom_call.1} parent=1 // pred_fallthru
      _
    // Predicated region
    $region26: #{tpu_custom_call.1} parent=1 // pred_check
      _
    $region27: #{tpu_custom_call.1} parent=1 // pred_check_branch
      %57 = sbr.rel (0) target = $region29
    $region28: #{tpu_custom_call.1} parent=1 // pred_region
      %58 = dma.done [#allocation6], 256
    $region29: #{tpu_custom_call.1} parent=1 // pred_fallthru
      _
    // Predicated region
    $region30: #{tpu_custom_call.1} parent=1 // pred_check
      _
    $region31: #{tpu_custom_call.1} parent=1 // pred_check_branch
      %60 = sbr.rel (0) target = $region33
    $region32: #{tpu_custom_call.1} parent=1 // pred_region
      %61 = dma.done [#allocation6], 1536
    $region33: #{tpu_custom_call.1} parent=1 // pred_fallthru
      _
    %v63 = vld [vmem:[#allocation2] sm:$0xf]
    %v64 = vld [vmem:[#allocation2 + $0x4] sm:$0xf]
    %v65 = vld [vmem:[#allocation5] sm:$0xff]
    %v66 = vld [vmem:[#allocation5 + $0x8] sm:$0xff]
    %v67 = vld [vmem:[#allocation7] sm:$0xf]
    %v68 = vld [vmem:[#allocation7 + $0x4] sm:$0xf]
    %v69 = vld [vmem:[#allocation7 + $0x8] sm:$0xf]
    %v70 = vld [vmem:[#allocation7 + $0xc] sm:$0xf]
    %v71 = vld [vmem:[#allocation7 + $0x10] sm:$0xf]
    %v72 = vld [vmem:[#allocation7 + $0x14] sm:$0xf]
    %v73 = vld [vmem:[#allocation7 + $0x18] sm:$0xf]
    %v74 = vld [vmem:[#allocation7 + $0x1c] sm:$0xf]
    %v75 = vpack.c.bf16 %v66, %v65
    %v78 = vunpack.c.l.b16 %v63
    %v79 = vunpack.c.l.b16 %v64
    %v80 = vpack.c.b16 %v79, %v78
    %vm81 = vcmask 130048
    %v83 = vsel %vm81, %v80, 0
    %85 = vmatprep.subr.bf16.mxu0 0
    %86 = vmatpush1.bf16.msra.mxu0 %v75
    %87 = vmatprep.subr.bf16.mxu0 0
    %88 = vmatpush1.bf16.msra.mxu0 0
    %89 = vmatprep.subr.bf16.mxu0 0
    %90 = vmatpush1.bf16.msra.mxu0 0
    %91 = vmatprep.subr.bf16.mxu0 0
    %92 = vmatpush1.bf16.msra.mxu0 0
    %93 = vmatprep.subr.bf16.mxu0 0
    %94 = vmatpush1.bf16.msra.mxu0 0
    %95 = vmatprep.subr.bf16.mxu0 0
    %96 = vmatpush1.bf16.msra.mxu0 0
    %97 = vmatprep.subr.bf16.mxu0 0
    %98 = vmatpush1.bf16.msra.mxu0 0
    %99 = vmatprep.subr.bf16.mxu0 0
    %100 = vmatpush1.bf16.msra.mxu0 0
    %101 = vmatprep.subr.bf16.mxu0 0
    %102 = vmatpush1.bf16.msra.mxu0 0
    %103 = vmatprep.subr.bf16.mxu0 0
    %104 = vmatpush1.bf16.msra.mxu0 0
    %105 = vmatprep.subr.bf16.mxu0 0
    %106 = vmatpush1.bf16.msra.mxu0 0
    %107 = vmatprep.subr.bf16.mxu0 0
    %108 = vmatpush1.bf16.msra.mxu0 0
    %109 = vmatprep.subr.bf16.mxu0 0
    %110 = vmatpush1.bf16.msra.mxu0 0
    %111 = vmatprep.subr.bf16.mxu0 0
    %112 = vmatpush1.bf16.msra.mxu0 0
    %113 = vmatprep.subr.bf16.mxu0 0
    %114 = vmatpush1.bf16.msra.mxu0 0
    %115 = vmatprep.subr.bf16.mxu0 0
    %116 = vmatpush1.bf16.msra.mxu0 0
    %117 = vmatprep.mubr.bf16.mxu0 0
    %118 = vmatmul.mubr.bf16.gmra.mrb[0].mxu0 %v83
    %v119 = vpop.f32.mrb[0].mxu0
    %v120 = vadd.f32 0.0, %v119
    %v121 = vpop.f32.mrb[0].mxu0
    %v122 = vpop.f32.mrb[0].mxu0
    %v123 = vadd.f32 0.0, %v122
    %v124 = vpop.f32.mrb[0].mxu0
    %125 = vdwg.mxu0
    %s126 = scalar_lea.vmem [#allocation7], 32
    %v127 = vld [vmem:[%s126] sm:$0xf]
    %v128 = vld [vmem:[%s126 + $0x4] sm:$0xf]
    %v129 = vld [vmem:[%s126 + $0x8] sm:$0xf]
    %v130 = vld [vmem:[%s126 + $0xc] sm:$0xf]
    %v131 = vld [vmem:[%s126 + $0x10] sm:$0xf]
    %v132 = vld [vmem:[%s126 + $0x14] sm:$0xf]
    %v133 = vld [vmem:[%s126 + $0x18] sm:$0xf]
    %v134 = vld [vmem:[%s126 + $0x1c] sm:$0xf]
    %v135 = vpack.c.bf16 %v123, %v120
    %v144 = vunpack.c.l.b16 %v127
    %v145 = vunpack.c.l.b16 %v128
    %v146 = vunpack.c.l.b16 %v129
    %v147 = vunpack.c.l.b16 %v130
    %v148 = vunpack.c.l.b16 %v131
    %v149 = vunpack.c.l.b16 %v132
    %v150 = vunpack.c.l.b16 %v133
    %v151 = vunpack.c.l.b16 %v134
    %v152 = vpack.c.b16 %v145, %v144
    %v153 = vpack.c.b16 %v147, %v146
    %v154 = vpack.c.b16 %v149, %v148
    %v155 = vpack.c.b16 %v151, %v150
    %vm160 = vcmask 523264
    %v162 = vsel %vm160, %v135, 0
    %164 = vmatprep.subr.bf16.mxu0 0
    %165 = vmatpush1.bf16.msra.mxu0 %v152
    %166 = vmatprep.subr.bf16.mxu0 0
    %167 = vmatpush1.bf16.msra.mxu0 %v153
    %168 = vmatprep.subr.bf16.mxu0 0
    %169 = vmatpush1.bf16.msra.mxu0 %v154
    %170 = vmatprep.subr.bf16.mxu0 0
    %171 = vmatpush1.bf16.msra.mxu0 %v155
    %172 = vmatprep.subr.bf16.mxu0 0
    %173 = vmatpush1.bf16.msra.mxu0 0
    %174 = vmatprep.subr.bf16.mxu0 0
    %175 = vmatpush1.bf16.msra.mxu0 0
    %176 = vmatprep.subr.bf16.mxu0 0
    %177 = vmatpush1.bf16.msra.mxu0 0
    %178 = vmatprep.subr.bf16.mxu0 0
    %179 = vmatpush1.bf16.msra.mxu0 0
    %180 = vmatprep.subr.bf16.mxu0 0
    %181 = vmatpush1.bf16.msra.mxu0 0
    %182 = vmatprep.subr.bf16.mxu0 0
    %183 = vmatpush1.bf16.msra.mxu0 0
    %184 = vmatprep.subr.bf16.mxu0 0
    %185 = vmatpush1.bf16.msra.mxu0 0
    %186 = vmatprep.subr.bf16.mxu0 0
    %187 = vmatpush1.bf16.msra.mxu0 0
    %188 = vmatprep.subr.bf16.mxu0 0
    %189 = vmatpush1.bf16.msra.mxu0 0
    %190 = vmatprep.subr.bf16.mxu0 0
    %191 = vmatpush1.bf16.msra.mxu0 0
    %192 = vmatprep.subr.bf16.mxu0 0
    %193 = vmatpush1.bf16.msra.mxu0 0
    %194 = vmatprep.subr.bf16.mxu0 0
    %195 = vmatpush1.bf16.msra.mxu0 0
    %196 = vmatprep.mubr.bf16.mxu0 0
    %197 = vmatmul.mubr.bf16.gmra.mrb[0].mxu0 %v162
    %v198 = vpop.f32.mrb[0].mxu0
    %v199 = vadd.f32 0.0, %v198
    %v200 = vpop.f32.mrb[0].mxu0
    %v201 = vpop.f32.mrb[0].mxu0
    %v202 = vadd.f32 0.0, %v201
    %v203 = vpop.f32.mrb[0].mxu0
    %204 = vdwg.mxu0
    %v213 = vunpack.c.l.b16 %v67
    %v214 = vunpack.c.l.b16 %v68
    %v215 = vunpack.c.l.b16 %v69
    %v216 = vunpack.c.l.b16 %v70
    %v217 = vunpack.c.l.b16 %v71
    %v218 = vunpack.c.l.b16 %v72
    %v219 = vunpack.c.l.b16 %v73
    %v220 = vunpack.c.l.b16 %v74
    %v221 = vpack.c.b16 %v214, %v213
    %v222 = vpack.c.b16 %v216, %v215
    %v223 = vpack.c.b16 %v218, %v217
    %v224 = vpack.c.b16 %v220, %v219
    %v230 = vsel %vm160, %v75, 0
    %232 = vmatprep.subr.bf16.mxu0 0
    %233 = vmatpush1.bf16.msra.mxu0 %v221
    %234 = vmatprep.subr.bf16.mxu0 0
    %235 = vmatpush1.bf16.msra.mxu0 %v222
    %236 = vmatprep.subr.bf16.mxu0 0
    %237 = vmatpush1.bf16.msra.mxu0 %v223
    %238 = vmatprep.subr.bf16.mxu0 0
    %239 = vmatpush1.bf16.msra.mxu0 %v224
    %240 = vmatprep.subr.bf16.mxu0 0
    %241 = vmatpush1.bf16.msra.mxu0 0
    %242 = vmatprep.subr.bf16.mxu0 0
    %243 = vmatpush1.bf16.msra.mxu0 0
    %244 = vmatprep.subr.bf16.mxu0 0
    %245 = vmatpush1.bf16.msra.mxu0 0
    %246 = vmatprep.subr.bf16.mxu0 0
    %247 = vmatpush1.bf16.msra.mxu0 0
    %248 = vmatprep.subr.bf16.mxu0 0
    %249 = vmatpush1.bf16.msra.mxu0 0
    %250 = vmatprep.subr.bf16.mxu0 0
    %251 = vmatpush1.bf16.msra.mxu0 0
    %252 = vmatprep.subr.bf16.mxu0 0
    %253 = vmatpush1.bf16.msra.mxu0 0
    %254 = vmatprep.subr.bf16.mxu0 0
    %255 = vmatpush1.bf16.msra.mxu0 0
    %256 = vmatprep.subr.bf16.mxu0 0
    %257 = vmatpush1.bf16.msra.mxu0 0
    %258 = vmatprep.subr.bf16.mxu0 0
    %259 = vmatpush1.bf16.msra.mxu0 0
    %260 = vmatprep.subr.bf16.mxu0 0
    %261 = vmatpush1.bf16.msra.mxu0 0
    %262 = vmatprep.subr.bf16.mxu0 0
    %263 = vmatpush1.bf16.msra.mxu0 0
    %264 = vmatprep.mubr.bf16.mxu0 0
    %265 = vmatmul.mubr.bf16.gmra.mrb[0].mxu0 %v230
    %v266 = vpop.f32.mrb[0].mxu0
    %v267 = vadd.f32 %v199, %v266
    %v268 = vpop.f32.mrb[0].mxu0
    %v269 = vpop.f32.mrb[0].mxu0
    %v270 = vadd.f32 %v202, %v269
    %v271 = vpop.f32.mrb[0].mxu0
    %272 = vdwg.mxu0
    %274 = vrot.lane.b32.xlu0 %v135, 64
    %v275 = vpop.permute.xlu0 %274
    %v277 = vsel %vm160, %v275, 0
    %279 = vmatprep.subr.bf16.mxu0 0
    %280 = vmatpush1.bf16.msra.mxu0 %v152
    %281 = vmatprep.subr.bf16.mxu0 0
    %282 = vmatpush1.bf16.msra.mxu0 %v153
    %283 = vmatprep.subr.bf16.mxu0 0
    %284 = vmatpush1.bf16.msra.mxu0 %v154
    %285 = vmatprep.subr.bf16.mxu0 0
    %286 = vmatpush1.bf16.msra.mxu0 %v155
    %287 = vmatprep.subr.bf16.mxu0 0
    %288 = vmatpush1.bf16.msra.mxu0 0
    %289 = vmatprep.subr.bf16.mxu0 0
    %290 = vmatpush1.bf16.msra.mxu0 0
    %291 = vmatprep.subr.bf16.mxu0 0
    %292 = vmatpush1.bf16.msra.mxu0 0
    %293 = vmatprep.subr.bf16.mxu0 0
    %294 = vmatpush1.bf16.msra.mxu0 0
    %295 = vmatprep.subr.bf16.mxu0 0
    %296 = vmatpush1.bf16.msra.mxu0 0
    %297 = vmatprep.subr.bf16.mxu0 0
    %298 = vmatpush1.bf16.msra.mxu0 0
    %299 = vmatprep.subr.bf16.mxu0 0
    %300 = vmatpush1.bf16.msra.mxu0 0
    %301 = vmatprep.subr.bf16.mxu0 0
    %302 = vmatpush1.bf16.msra.mxu0 0
    %303 = vmatprep.subr.bf16.mxu0 0
    %304 = vmatpush1.bf16.msra.mxu0 0
    %305 = vmatprep.subr.bf16.mxu0 0
    %306 = vmatpush1.bf16.msra.mxu0 0
    %307 = vmatprep.subr.bf16.mxu0 0
    %308 = vmatpush1.bf16.msra.mxu0 0
    %309 = vmatprep.subr.bf16.mxu0 0
    %310 = vmatpush1.bf16.msra.mxu0 0
    %311 = vmatprep.mubr.bf16.mxu0 0
    %312 = vmatmul.mubr.bf16.gmra.mrb[0].mxu0 %v277
    %v313 = vpop.f32.mrb[0].mxu0
    %v314 = vadd.f32 0.0, %v313
    %v315 = vpop.f32.mrb[0].mxu0
    %v316 = vpop.f32.mrb[0].mxu0
    %v317 = vadd.f32 0.0, %v316
    %v318 = vpop.f32.mrb[0].mxu0
    %319 = vdwg.mxu0
    %321 = vrot.lane.b32.xlu0 %v75, 64
    %v322 = vpop.permute.xlu0 %321
    %v324 = vsel %vm160, %v322, 0
    %326 = vmatprep.subr.bf16.mxu0 0
    %327 = vmatpush1.bf16.msra.mxu0 %v221
    %328 = vmatprep.subr.bf16.mxu0 0
    %329 = vmatpush1.bf16.msra.mxu0 %v222
    %330 = vmatprep.subr.bf16.mxu0 0
    %331 = vmatpush1.bf16.msra.mxu0 %v223
    %332 = vmatprep.subr.bf16.mxu0 0
    %333 = vmatpush1.bf16.msra.mxu0 %v224
    %334 = vmatprep.subr.bf16.mxu0 0
    %335 = vmatpush1.bf16.msra.mxu0 0
    %336 = vmatprep.subr.bf16.mxu0 0
    %337 = vmatpush1.bf16.msra.mxu0 0
    %338 = vmatprep.subr.bf16.mxu0 0
    %339 = vmatpush1.bf16.msra.mxu0 0
    %340 = vmatprep.subr.bf16.mxu0 0
    %341 = vmatpush1.bf16.msra.mxu0 0
    %342 = vmatprep.subr.bf16.mxu0 0
    %343 = vmatpush1.bf16.msra.mxu0 0
    %344 = vmatprep.subr.bf16.mxu0 0
    %345 = vmatpush1.bf16.msra.mxu0 0
    %346 = vmatprep.subr.bf16.mxu0 0
    %347 = vmatpush1.bf16.msra.mxu0 0
    %348 = vmatprep.subr.bf16.mxu0 0
    %349 = vmatpush1.bf16.msra.mxu0 0
    %350 = vmatprep.subr.bf16.mxu0 0
    %351 = vmatpush1.bf16.msra.mxu0 0
    %352 = vmatprep.subr.bf16.mxu0 0
    %353 = vmatpush1.bf16.msra.mxu0 0
    %354 = vmatprep.subr.bf16.mxu0 0
    %355 = vmatpush1.bf16.msra.mxu0 0
    %356 = vmatprep.subr.bf16.mxu0 0
    %357 = vmatpush1.bf16.msra.mxu0 0
    %358 = vmatprep.mubr.bf16.mxu0 0
    %359 = vmatmul.mubr.bf16.gmra.mrb[0].mxu0 %v324
    %v360 = vpop.f32.mrb[0].mxu0
    %v361 = vadd.f32 %v314, %v360
    %v362 = vpop.f32.mrb[0].mxu0
    %v363 = vpop.f32.mrb[0].mxu0
    %v364 = vadd.f32 %v317, %v363
    %v365 = vpop.f32.mrb[0].mxu0
    %366 = vdwg.mxu0
    %v367 = vadd.f32 %v120, %v120
    %v368 = vadd.f32 %v123, %v123
    %v369 = vpack.c.bf16 %v368, %v367
    %370 = vmatprep.subr.bf16.mxu0 0
    %371 = vmatpush1.bf16.msra.mxu0 %v369
    %372 = vmatprep.subr.bf16.mxu0 0
    %373 = vmatpush1.bf16.msra.mxu0 0
    %374 = vmatprep.subr.bf16.mxu0 0
    %375 = vmatpush1.bf16.msra.mxu0 0
    %376 = vmatprep.subr.bf16.mxu0 0
    %377 = vmatpush1.bf16.msra.mxu0 0
    %378 = vmatprep.subr.bf16.mxu0 0
    %379 = vmatpush1.bf16.msra.mxu0 0
    %380 = vmatprep.subr.bf16.mxu0 0
    %381 = vmatpush1.bf16.msra.mxu0 0
    %382 = vmatprep.subr.bf16.mxu0 0
    %383 = vmatpush1.bf16.msra.mxu0 0
    %384 = vmatprep.subr.bf16.mxu0 0
    %385 = vmatpush1.bf16.msra.mxu0 0
    %386 = vmatprep.subr.bf16.mxu0 0
    %387 = vmatpush1.bf16.msra.mxu0 0
    %388 = vmatprep.subr.bf16.mxu0 0
    %389 = vmatpush1.bf16.msra.mxu0 0
    %390 = vmatprep.subr.bf16.mxu0 0
    %391 = vmatpush1.bf16.msra.mxu0 0
    %392 = vmatprep.subr.bf16.mxu0 0
    %393 = vmatpush1.bf16.msra.mxu0 0
    %394 = vmatprep.subr.bf16.mxu0 0
    %395 = vmatpush1.bf16.msra.mxu0 0
    %396 = vmatprep.subr.bf16.mxu0 0
    %397 = vmatpush1.bf16.msra.mxu0 0
    %398 = vmatprep.subr.bf16.mxu0 0
    %399 = vmatpush1.bf16.msra.mxu0 0
    %400 = vmatprep.subr.bf16.mxu0 0
    %401 = vmatpush1.bf16.msra.mxu0 0
    %402 = vmatprep.mubr.bf16.mxu0 0
    %403 = vmatmul.mubr.bf16.gmra.mrb[0].mxu0 %v83
    %v404 = vpop.f32.mrb[0].mxu0
    %v405 = vadd.f32 0.0, %v404
    %v406 = vpop.f32.mrb[0].mxu0
    %v407 = vpop.f32.mrb[0].mxu0
    %v408 = vadd.f32 0.0, %v407
    %v409 = vpop.f32.mrb[0].mxu0
    %410 = vdwg.mxu0
    %v411 = vsub.f32 %v405, %v65
    %v412 = vsub.f32 %v408, %v66
    %s413 = scalar_lea.vmem [#allocation7], 64
    %v414 = vld [vmem:[%s413] sm:$0xf]
    %v415 = vld [vmem:[%s413 + $0x4] sm:$0xf]
    %v416 = vld [vmem:[%s413 + $0x8] sm:$0xf]
    %v417 = vld [vmem:[%s413 + $0xc] sm:$0xf]
    %v418 = vld [vmem:[%s413 + $0x10] sm:$0xf]
    %v419 = vld [vmem:[%s413 + $0x14] sm:$0xf]
    %v420 = vld [vmem:[%s413 + $0x18] sm:$0xf]
    %v421 = vld [vmem:[%s413 + $0x1c] sm:$0xf]
    %v422 = vpack.c.bf16 %v412, %v411
    %v431 = vunpack.c.l.b16 %v414
    %v432 = vunpack.c.l.b16 %v415
    %v433 = vunpack.c.l.b16 %v416
    %v434 = vunpack.c.l.b16 %v417
    %v435 = vunpack.c.l.b16 %v418
    %v436 = vunpack.c.l.b16 %v419
    %v437 = vunpack.c.l.b16 %v420
    %v438 = vunpack.c.l.b16 %v421
    %v439 = vpack.c.b16 %v432, %v431
    %v440 = vpack.c.b16 %v434, %v433
    %v441 = vpack.c.b16 %v436, %v435
    %v442 = vpack.c.b16 %v438, %v437
    %v448 = vsel %vm160, %v422, 0
    %450 = vmatprep.subr.bf16.mxu0 0
    %451 = vmatpush1.bf16.msra.mxu0 %v439
    %452 = vmatprep.subr.bf16.mxu0 0
    %453 = vmatpush1.bf16.msra.mxu0 %v440
    %454 = vmatprep.subr.bf16.mxu0 0
    %455 = vmatpush1.bf16.msra.mxu0 %v441
    %456 = vmatprep.subr.bf16.mxu0 0
    %457 = vmatpush1.bf16.msra.mxu0 %v442
    %458 = vmatprep.subr.bf16.mxu0 0
    %459 = vmatpush1.bf16.msra.mxu0 0
    %460 = vmatprep.subr.bf16.mxu0 0
    %461 = vmatpush1.bf16.msra.mxu0 0
    %462 = vmatprep.subr.bf16.mxu0 0
    %463 = vmatpush1.bf16.msra.mxu0 0
    %464 = vmatprep.subr.bf16.mxu0 0
    %465 = vmatpush1.bf16.msra.mxu0 0
    %466 = vmatprep.subr.bf16.mxu0 0
    %467 = vmatpush1.bf16.msra.mxu0 0
    %468 = vmatprep.subr.bf16.mxu0 0
    %469 = vmatpush1.bf16.msra.mxu0 0
    %470 = vmatprep.subr.bf16.mxu0 0
    %471 = vmatpush1.bf16.msra.mxu0 0
    %472 = vmatprep.subr.bf16.mxu0 0
    %473 = vmatpush1.bf16.msra.mxu0 0
    %474 = vmatprep.subr.bf16.mxu0 0
    %475 = vmatpush1.bf16.msra.mxu0 0
    %476 = vmatprep.subr.bf16.mxu0 0
    %477 = vmatpush1.bf16.msra.mxu0 0
    %478 = vmatprep.subr.bf16.mxu0 0
    %479 = vmatpush1.bf16.msra.mxu0 0
    %480 = vmatprep.subr.bf16.mxu0 0
    %481 = vmatpush1.bf16.msra.mxu0 0
    %482 = vmatprep.mubr.bf16.mxu0 0
    %483 = vmatmul.mubr.bf16.gmra.mrb[0].mxu0 %v448
    %v484 = vpop.f32.mrb[0].mxu0
    %v485 = vadd.f32 0.0, %v484
    %v486 = vpop.f32.mrb[0].mxu0
    %v487 = vpop.f32.mrb[0].mxu0
    %v488 = vadd.f32 0.0, %v487
    %v489 = vpop.f32.mrb[0].mxu0
    %490 = vdwg.mxu0
    %v491 = vadd.f32 %v267, %v485
    %v492 = vadd.f32 %v270, %v488
    %494 = vrot.lane.b32.xlu0 %v422, 64
    %v495 = vpop.permute.xlu0 %494
    %v497 = vsel %vm160, %v495, 0
    %499 = vmatprep.subr.bf16.mxu0 0
    %500 = vmatpush1.bf16.msra.mxu0 %v439
    %501 = vmatprep.subr.bf16.mxu0 0
    %502 = vmatpush1.bf16.msra.mxu0 %v440
    %503 = vmatprep.subr.bf16.mxu0 0
    %504 = vmatpush1.bf16.msra.mxu0 %v441
    %505 = vmatprep.subr.bf16.mxu0 0
    %506 = vmatpush1.bf16.msra.mxu0 %v442
    %507 = vmatprep.subr.bf16.mxu0 0
    %508 = vmatpush1.bf16.msra.mxu0 0
    %509 = vmatprep.subr.bf16.mxu0 0
    %510 = vmatpush1.bf16.msra.mxu0 0
    %511 = vmatprep.subr.bf16.mxu0 0
    %512 = vmatpush1.bf16.msra.mxu0 0
    %513 = vmatprep.subr.bf16.mxu0 0
    %514 = vmatpush1.bf16.msra.mxu0 0
    %515 = vmatprep.subr.bf16.mxu0 0
    %516 = vmatpush1.bf16.msra.mxu0 0
    %517 = vmatprep.subr.bf16.mxu0 0
    %518 = vmatpush1.bf16.msra.mxu0 0
    %519 = vmatprep.subr.bf16.mxu0 0
    %520 = vmatpush1.bf16.msra.mxu0 0
    %521 = vmatprep.subr.bf16.mxu0 0
    %522 = vmatpush1.bf16.msra.mxu0 0
    %523 = vmatprep.subr.bf16.mxu0 0
    %524 = vmatpush1.bf16.msra.mxu0 0
    %525 = vmatprep.subr.bf16.mxu0 0
    %526 = vmatpush1.bf16.msra.mxu0 0
    %527 = vmatprep.subr.bf16.mxu0 0
    %528 = vmatpush1.bf16.msra.mxu0 0
    %529 = vmatprep.subr.bf16.mxu0 0
    %530 = vmatpush1.bf16.msra.mxu0 0
    %531 = vmatprep.mubr.bf16.mxu0 0
    %532 = vmatmul.mubr.bf16.gmra.mrb[0].mxu0 %v497
    %v533 = vpop.f32.mrb[0].mxu0
    %v534 = vadd.f32 0.0, %v533
    %v535 = vpop.f32.mrb[0].mxu0
    %v536 = vpop.f32.mrb[0].mxu0
    %v537 = vadd.f32 0.0, %v536
    %v538 = vpop.f32.mrb[0].mxu0
    %539 = vdwg.mxu0
    %v540 = vadd.f32 %v361, %v534
    %v541 = vadd.f32 %v364, %v537
    %v542 = vld [vmem:[%s3] sm:$0x1]
    %v544 = vlaneseq
    %v545 = vshrl.u32 %v544, 7
    %v546 = vsub.s32 0, %v545
    %v547 = vrot.slane %v542, %v546
    %v549 = vadd.f32 %v491, %v547
    %v550 = vadd.f32 %v492, %v547
    %vm551 = vcmp.gt.f32.partialorder %v549, 0.0
    %vm552 = vcmp.gt.f32.partialorder %v550, 0.0
    %v553 = vmin.f32 %v549, 0.0
    %v554 = vmin.f32 %v550, 0.0
    %v555 = vmul.f32 %v553, 1.442695
    %v556 = vpow.pop %v555
    %v557 = vmul.f32 %v554, 1.442695
    %v558 = vpow.pop %v557
    %v559 = vsub.f32 %v556, 1.0
    %v560 = vsub.f32 %v558, 1.0
    %v561 = vsel %vm551, %v549, %v559
    %v562 = vsel %vm552, %v550, %v560
    %v563 = vadd.f32 %v540, %v547
    %v564 = vadd.f32 %v541, %v547
    %vm565 = vcmp.gt.f32.partialorder %v563, 0.0
    %vm566 = vcmp.gt.f32.partialorder %v564, 0.0
    %v567 = vmin.f32 %v563, 0.0
    %v568 = vmin.f32 %v564, 0.0
    %v569 = vmul.f32 %v567, 1.442695
    %v570 = vpow.pop %v569
    %v571 = vmul.f32 %v568, 1.442695
    %v572 = vpow.pop %v571
    %v573 = vsub.f32 %v570, 1.0
    %v574 = vsub.f32 %v572, 1.0
    %v575 = vsel %vm565, %v563, %v573
    %v576 = vsel %vm566, %v564, %v574
    %579 = vrot.lane.b32.xlu0 %v575, 64
    %v580 = vpop.permute.xlu0 %579
    %581 = vrot.lane.b32.xlu0 %v576, 64
    %v582 = vpop.permute.xlu0 %581
    %v585 = vsel %vm160, %v561, %v580
    %v586 = vsel %vm160, %v562, %v582
    %v587 = vld [vmem:[%s4] sm:$0xf]
    %v588 = vpack.c.bf16 %v586, %v585
    %v590 = vsel %vm81, %v587, 0
    %592 = vmatprep.subr.bf16.mxu0 0
    %593 = vmatpush1.bf16.msra.mxu0 %v588
    %594 = vmatprep.subr.bf16.mxu0 0
    %595 = vmatpush1.bf16.msra.mxu0 0
    %596 = vmatprep.subr.bf16.mxu0 0
    %597 = vmatpush1.bf16.msra.mxu0 0
    %598 = vmatprep.subr.bf16.mxu0 0
    %599 = vmatpush1.bf16.msra.mxu0 0
    %600 = vmatprep.subr.bf16.mxu0 0
    %601 = vmatpush1.bf16.msra.mxu0 0
    %602 = vmatprep.subr.bf16.mxu0 0
    %603 = vmatpush1.bf16.msra.mxu0 0
    %604 = vmatprep.subr.bf16.mxu0 0
    %605 = vmatpush1.bf16.msra.mxu0 0
    %606 = vmatprep.subr.bf16.mxu0 0
    %607 = vmatpush1.bf16.msra.mxu0 0
    %608 = vmatprep.subr.bf16.mxu0 0
    %609 = vmatpush1.bf16.msra.mxu0 0
    %610 = vmatprep.subr.bf16.mxu0 0
    %611 = vmatpush1.bf16.msra.mxu0 0
    %612 = vmatprep.subr.bf16.mxu0 0
    %613 = vmatpush1.bf16.msra.mxu0 0
    %614 = vmatprep.subr.bf16.mxu0 0
    %615 = vmatpush1.bf16.msra.mxu0 0
    %616 = vmatprep.subr.bf16.mxu0 0
    %617 = vmatpush1.bf16.msra.mxu0 0
    %618 = vmatprep.subr.bf16.mxu0 0
    %619 = vmatpush1.bf16.msra.mxu0 0
    %620 = vmatprep.subr.bf16.mxu0 0
    %621 = vmatpush1.bf16.msra.mxu0 0
    %622 = vmatprep.subr.bf16.mxu0 0
    %623 = vmatpush1.bf16.msra.mxu0 0
    %624 = vmatprep.mubr.bf16.mxu0 0
    %625 = vmatmul.mubr.bf16.gmra.mrb[0].mxu0 %v590
    %v626 = vpop.f32.mrb[0].mxu0
    %v627 = vadd.f32 0.0, %v626
    %v628 = vpop.f32.mrb[0].mxu0
    %v629 = vpop.f32.mrb[0].mxu0
    %v630 = vpop.f32.mrb[0].mxu0
    %631 = vdwg.mxu0
    %632 = vst [vmem:[#allocation8] sm:$0xff] %v627
    // Predicated region
    $region34: #{tpu_custom_call.1} parent=1 // pred_check
      _
    $region35: #{tpu_custom_call.1} parent=1 // pred_check_branch
      %634 = sbr.rel (0) target = $region37
    $region36: #{tpu_custom_call.1} parent=1 // pred_region
      %s636 = ssub.s32 128, 128
      %637 = vsyncadd [#allocation4], %s636
      %s639 = sshll.u32 [#allocation8], 4
      %s640 = int_to_ptr.vmem [resolvable:$true] %s639
      %642 = dma.vmem_to_hbm [thread:$0]  %s640, 128, %s5, [#allocation4]
    $region37: #{tpu_custom_call.1} parent=1 // pred_fallthru
      _
    // Predicated region
    $region38: #{tpu_custom_call.1} parent=1 // pred_check
      _
    $region39: #{tpu_custom_call.1} parent=1 // pred_check_branch
      %644 = sbr.rel (0) target = $region41
    $region40: #{tpu_custom_call.1} parent=1 // pred_region
      %645 = dma.done [#allocation4], 128
    $region41: #{tpu_custom_call.1} parent=1 // pred_fallthru
      _
    %646 = vsyncpa [#allocation3], 1
    %647 = vsyncpa [#allocation6], 1
    %648 = vsyncpa [#allocation4], 1

</llo_original>
